<compile_context>
chip_gen: v7x
topology: tpu7x:2x2x1
jax: 0.10.0
libtpu: 0.0.40
codegen_flags: <defaults>
</compile_context>

<pallas_src>
import functools
import math

import jax
import jax.numpy as jnp
from jax.experimental import pallas as pl
from jax.experimental.pallas import tpu as pltpu  # noqa: F401  (kept for TPU-side extensions)

# Undefined globals in the original PyTorch snippet -> fixed deterministically here.
INV_SCALE_FACTOR = math.sqrt(4.0)   # sqrt(head_dim)
DROPOUT_P = 0.1


def _sdpa_kernel(q_ref, k_ref, v_ref, u_ref, o_ref, *,
                 dropout_p, inv_scale, training):
    """Whole problem in one invocation.

    q_ref: (B, M, D), k_ref: (B, N, D), v_ref: (B, N, E),
    u_ref: (B, M, N) uniform [0,1) randoms for dropout, o_ref: (B, M, E).
    """
    compute_dtype = jnp.bfloat16

    # Fold 1/inv_scale into Q once, cast operands to bf16 (native MXU path).
    q = (q_ref[...].astype(jnp.float32) * (1.0 / inv_scale)).astype(compute_dtype)
    k = k_ref[...].astype(compute_dtype)
    v = v_ref[...].astype(compute_dtype)

    # scores = (q / inv_scale) @ k^T : contract D axes directly, batch over B.
    s = jax.lax.dot_general(
        q, k,
        dimension_numbers=(((2,), (2,)), ((0,), (0,))),
        preferred_element_type=jnp.float32)            # (B, M, N) f32

    # Numerically-stable softmax along N.
    s = s - jnp.max(s, axis=-1, keepdims=True)
    e = jnp.exp(s)
    denom = jnp.sum(e, axis=-1, keepdims=True)

    if training and dropout_p > 0.0:
        # Inverted-dropout 1/(1-p) folded into the denominator (exact, applied
        # before the mask), so the mask is a pure select with no extra multiply.
        denom = denom * (1.0 - dropout_p)
        p = e / denom
        keep = u_ref[...] >= jnp.float32(dropout_p)     # P(keep) = 1 - p
        p = jnp.where(keep, p, jnp.zeros_like(p))
    else:
        p = e / denom

    # output = dropout(softmax(qk)) @ value (bf16 operands, f32 accumulate).
    o = jax.lax.dot_general(
        p.astype(compute_dtype), v,
        dimension_numbers=(((2,), (1,)), ((0,), (0,))),
        preferred_element_type=jnp.float32)             # (B, M, E)

    o_ref[...] = o.astype(o_ref.dtype)


def sdpa_pallas(query, key, value, *, rng_key=None,
                dropout_p=DROPOUT_P, inv_scale_factor=INV_SCALE_FACTOR,
                training=True):
    B, M, D = query.shape
    Bk, N, Dk = key.shape
    Bv, Nv, E = value.shape
    assert B == Bk == Bv and D == Dk and N == Nv

    if rng_key is None:
        rng_key = jax.random.PRNGKey(0)
    # Dropout randomness generated XLA-side and streamed into the kernel
    # (keeps the kernel runnable in interpret mode, which has no on-chip PRNG).
    # TODO(synk): on hardware-only builds, switch back to in-kernel
    # pltpu.prng_seed/prng_random_bits to avoid the extra (B, M, N) HBM read.
    u = jax.random.uniform(rng_key, (B, M, N), dtype=jnp.float32)

    kernel = functools.partial(
        _sdpa_kernel,
        dropout_p=float(dropout_p),
        inv_scale=float(inv_scale_factor),
        training=bool(training))

    flops = 2 * B * M * N * D + 2 * B * M * N * E
    bytes_accessed = (query.size * query.dtype.itemsize
                      + key.size * key.dtype.itemsize
                      + value.size * value.dtype.itemsize
                      + u.size * u.dtype.itemsize
                      + B * M * E * query.dtype.itemsize)

    return pl.pallas_call(
        kernel,
        out_shape=jax.ShapeDtypeStruct((B, M, E), query.dtype),
        cost_estimate=pl.CostEstimate(
            flops=flops,
            transcendentals=B * M * N,
            bytes_accessed=bytes_accessed),
    )(query, key, value, u)


if __name__ == "__main__":
    # Small shapes consistent with the SDPA pattern implied by the module.
    B, M, N, D, E = 2, 3, 5, 4, 6
    k0, k1, k2, k3 = jax.random.split(jax.random.PRNGKey(0), 4)
    query = jax.random.normal(k0, (B, M, D), dtype=jnp.float32)
    key = jax.random.normal(k1, (B, N, D), dtype=jnp.float32)
    value = jax.random.normal(k2, (B, N, E), dtype=jnp.float32)

    out = sdpa_pallas(query, key, value, rng_key=k3)
    jax.block_until_ready(out)
    assert out.shape == (B, M, E)
    print("KERNEL_OK")
</pallas_src>

<mosaic_0001>
module attributes {stable_mosaic.version = 11 : i64} {
  func.func @_sdpa_kernel(%arg0: memref<2x3x4xf32, #tpu.memory_space<vmem>>, %arg1: memref<2x5x4xf32, #tpu.memory_space<vmem>>, %arg2: memref<2x5x6xf32, #tpu.memory_space<vmem>>, %arg3: memref<2x3x5xf32, #tpu.memory_space<vmem>>, %arg4: memref<2x3x6xf32, #tpu.memory_space<vmem>>) attributes {dimension_semantics = [], scalar_prefetch = 0 : i64, scratch_operands = 0 : i64, tpu.core_type = #tpu.core_type<tc>} {
    %c0 = arith.constant 0 : index
    %c0_0 = arith.constant 0 : index
    %c0_1 = arith.constant 0 : index
    %0 = vector.load %arg0[%c0, %c0_0, %c0_1] : memref<2x3x4xf32, #tpu.memory_space<vmem>>, vector<2x3x4xf32>
    %cst = arith.constant 5.000000e-01 : f32
    %1 = vector.broadcast %cst : f32 to vector<2x3x4xf32>
    %2 = arith.mulf %0, %1 : vector<2x3x4xf32>
    %3 = arith.truncf %2 : vector<2x3x4xf32> to vector<2x3x4xbf16>
    %c0_2 = arith.constant 0 : index
    %c0_3 = arith.constant 0 : index
    %c0_4 = arith.constant 0 : index
    %4 = vector.load %arg1[%c0_2, %c0_3, %c0_4] : memref<2x5x4xf32, #tpu.memory_space<vmem>>, vector<2x5x4xf32>
    %5 = arith.truncf %4 : vector<2x5x4xf32> to vector<2x5x4xbf16>
    %c0_5 = arith.constant 0 : index
    %c0_6 = arith.constant 0 : index
    %c0_7 = arith.constant 0 : index
    %6 = vector.load %arg2[%c0_5, %c0_6, %c0_7] : memref<2x5x6xf32, #tpu.memory_space<vmem>>, vector<2x5x6xf32>
    %7 = arith.truncf %6 : vector<2x5x6xf32> to vector<2x5x6xbf16>
    %cst_8 = arith.constant dense<0.000000e+00> : vector<2x3x5xf32>
    %8 = tpu.matmul %3, %5, %cst_8 {dimension_numbers = #tpu.dot_dimension_numbers<[2], [2], [1], [1], [0, 0, 0, 1, 1, 1], [0], [0]>} : vector<2x3x4xbf16>, vector<2x5x4xbf16>, vector<2x3x5xf32> -> vector<2x3x5xf32>
    %cst_9 = arith.constant dense<0xFF800000> : vector<2x3xf32>
    %9 = vector.multi_reduction <maximumf>, %8, %cst_9 [2] : vector<2x3x5xf32> to vector<2x3xf32>
    %10 = vector.shape_cast %9 : vector<2x3xf32> to vector<2x3x1xf32>
    %11 = vector.broadcast %10 : vector<2x3x1xf32> to vector<2x3x5xf32>
    %12 = arith.subf %8, %11 : vector<2x3x5xf32>
    %13 = math.exp %12 : vector<2x3x5xf32>
    %cst_10 = arith.constant dense<0.000000e+00> : vector<2x3xf32>
    %14 = vector.multi_reduction <add>, %13, %cst_10 [2] : vector<2x3x5xf32> to vector<2x3xf32>
    %15 = vector.shape_cast %14 : vector<2x3xf32> to vector<2x3x1xf32>
    %cst_11 = arith.constant 0.899999976 : f32
    %16 = vector.broadcast %cst_11 : f32 to vector<2x3x1xf32>
    %17 = arith.mulf %15, %16 : vector<2x3x1xf32>
    %18 = vector.broadcast %17 : vector<2x3x1xf32> to vector<2x3x5xf32>
    %19 = arith.divf %13, %18 : vector<2x3x5xf32>
    %c0_12 = arith.constant 0 : index
    %c0_13 = arith.constant 0 : index
    %c0_14 = arith.constant 0 : index
    %20 = vector.load %arg3[%c0_12, %c0_13, %c0_14] : memref<2x3x5xf32, #tpu.memory_space<vmem>>, vector<2x3x5xf32>
    %cst_15 = arith.constant 1.000000e-01 : f32
    %21 = vector.broadcast %cst_15 : f32 to vector<2x3x5xf32>
    %22 = arith.cmpf oge, %20, %21 : vector<2x3x5xf32>
    %cst_16 = arith.constant 0.000000e+00 : f32
    %23 = vector.broadcast %cst_16 : f32 to vector<2x3x5xf32>
    %24 = arith.select %22, %19, %23 : vector<2x3x5xi1>, vector<2x3x5xf32>
    %25 = arith.truncf %24 : vector<2x3x5xf32> to vector<2x3x5xbf16>
    %cst_17 = arith.constant dense<0.000000e+00> : vector<2x3x6xf32>
    %26 = tpu.matmul %25, %7, %cst_17 {dimension_numbers = #tpu.dot_dimension_numbers<[2], [1], [1], [2], [0, 0, 0, 1, 1, 2], [0], [0]>} : vector<2x3x5xbf16>, vector<2x5x6xbf16>, vector<2x3x6xf32> -> vector<2x3x6xf32>
    %c0_18 = arith.constant 0 : index
    %c0_19 = arith.constant 0 : index
    %c0_20 = arith.constant 0 : index
    %27 = vector.load %arg4[%c0_18, %c0_19, %c0_20] : memref<2x3x6xf32, #tpu.memory_space<vmem>>, vector<2x3x6xf32>
    tpu.vector_store %arg4[%c0_18, %c0_19, %c0_20], %26 {strides = array<i32>} : memref<2x3x6xf32, #tpu.memory_space<vmem>>, vector<2x3x6xf32>,
    return
  }
}

</mosaic_0001>

<llo_original>
// kernel: tpu_custom_call.1
$region0: #{tpu_custom_call.1}
  #allocation0 [shape = 'u32[]', space=smem, size = 0x4, offset = 0x4, fixed_abs, tag = 'smem constant byte address 0x4 - core index']
  #allocation1 [shape = 'u32[144,128]{1,0:T(1,128)}', space=vmem, size = 0x12000, scoped, tag = 'internal scratch']
  %s0 = inlined_call_operand.vmem [shape: f32[2,3,4], index: 0, kind: input, shape index: {}]
  %s1 = inlined_call_operand.vmem [shape: f32[2,5,4], index: 1, kind: input, shape index: {}]
  %s2 = inlined_call_operand.vmem [shape: f32[2,5,6], index: 2, kind: input, shape index: {}]
  %s3 = inlined_call_operand.vmem [shape: f32[2,3,5], index: 3, kind: input, shape index: {}]
  %s4 = inlined_call_operand.vmem [shape: f32[2,3,6], index: 4, kind: output, shape index: {}]
  %s5 = sld [smem:[#allocation0]]
  $region26: #{tpu_custom_call.1} parent=0
    _
  %s7 = ssub.s32 1, %s5
  %s8 = scalar_select 0, %s7, %s5
  // Predicated region
  $region2: #{tpu_custom_call.1} parent=0 // pred_check
    _
  $region3: #{tpu_custom_call.1} parent=0 // pred_check_branch
    %10 = sbr.rel (0) target = $region5
  $region4: #{tpu_custom_call.1} parent=0 // pred_region
    _
  $region5: #{tpu_custom_call.1} parent=0 // pred_fallthru
    _
  // Predicated region
  $region6: #{tpu_custom_call.1} parent=0 // pred_check
    _
  $region7: #{tpu_custom_call.1} parent=0 // pred_check_branch
    %12 = sbr.rel (0) target = $region9
  $region8: #{tpu_custom_call.1} parent=0 // pred_region
    _
  $region9: #{tpu_custom_call.1} parent=0 // pred_fallthru
    _
  // Predicated region
  $region10: #{tpu_custom_call.1} parent=0 // pred_check
    _
  $region11: #{tpu_custom_call.1} parent=0 // pred_check_branch
    %14 = sbr.rel (0) target = $region13
  $region12: #{tpu_custom_call.1} parent=0 // pred_region
    _
  $region13: #{tpu_custom_call.1} parent=0 // pred_fallthru
    _
  // Predicated region
  $region14: #{tpu_custom_call.1} parent=0 // pred_check
    _
  $region15: #{tpu_custom_call.1} parent=0 // pred_check_branch
    %16 = sbr.rel (0) target = $region17
  $region16: #{tpu_custom_call.1} parent=0 // pred_region
    _
  $region17: #{tpu_custom_call.1} parent=0 // pred_fallthru
    _
  %v18 = vld [vmem:[%s0] sm:$0x7]
  %v19 = vld [vmem:[%s0 + $0x4] sm:$0x7]
  %v20 = vmul.f32 %v18, 0.5
  %v21 = vmul.f32 %v19, 0.5
  %v22 = vpack.c.bf16 %v20, %v20
  %v23 = vpack.c.bf16 %v21, %v21
  %v24 = vld [vmem:[%s1] sm:$0x1f]
  %v25 = vld [vmem:[%s1 + $0x8] sm:$0x1f]
  %v26 = vpack.c.bf16 %v24, %v24
  %v27 = vpack.c.bf16 %v25, %v25
  %v28 = vld [vmem:[%s2] sm:$0x1f]
  %v29 = vld [vmem:[%s2 + $0x8] sm:$0x1f]
  %v30 = vpack.c.bf16 %v28, %v28
  %v31 = vpack.c.bf16 %v29, %v29
  %vm32 = vcmask 31744
  %v34 = vsel %vm32, %v22, 0
  %v37 = vsel %vm32, %v26, 0
  %39 = vmatprep.subr.bf16.mxu0 0
  %40 = vmatpush1.bf16.xpose.msra.mxu0 %v37
  %41 = vmatprep.subr.bf16.mxu0 0
  %42 = vmatpush1.bf16.xpose.msra.mxu0 0
  %43 = vmatprep.subr.bf16.mxu0 0
  %44 = vmatpush1.bf16.xpose.msra.mxu0 0
  %45 = vmatprep.subr.bf16.mxu0 0
  %46 = vmatpush1.bf16.xpose.msra.mxu0 0
  %47 = vmatprep.subr.bf16.mxu0 0
  %48 = vmatpush1.bf16.xpose.msra.mxu0 0
  %49 = vmatprep.subr.bf16.mxu0 0
  %50 = vmatpush1.bf16.xpose.msra.mxu0 0
  %51 = vmatprep.subr.bf16.mxu0 0
  %52 = vmatpush1.bf16.xpose.msra.mxu0 0
  %53 = vmatprep.subr.bf16.mxu0 0
  %54 = vmatpush1.bf16.xpose.msra.mxu0 0
  %55 = vmatprep.subr.bf16.mxu0 0
  %56 = vmatpush1.bf16.xpose.msra.mxu0 0
  %57 = vmatprep.subr.bf16.mxu0 0
  %58 = vmatpush1.bf16.xpose.msra.mxu0 0
  %59 = vmatprep.subr.bf16.mxu0 0
  %60 = vmatpush1.bf16.xpose.msra.mxu0 0
  %61 = vmatprep.subr.bf16.mxu0 0
  %62 = vmatpush1.bf16.xpose.msra.mxu0 0
  %63 = vmatprep.subr.bf16.mxu0 0
  %64 = vmatpush1.bf16.xpose.msra.mxu0 0
  %65 = vmatprep.subr.bf16.mxu0 0
  %66 = vmatpush1.bf16.xpose.msra.mxu0 0
  %67 = vmatprep.subr.bf16.mxu0 0
  %68 = vmatpush1.bf16.xpose.msra.mxu0 0
  %69 = vmatprep.subr.bf16.mxu0 0
  %70 = vmatpush1.bf16.xpose.msra.mxu0 0
  %71 = vmatprep.mubr.bf16.mxu0 0
  %72 = vmatmul.mubr.bf16.gmra.mrb[0].mxu0 %v34
  %v73 = vpop.f32.mrb[0].mxu0
  %v74 = vadd.f32 0.0, %v73
  %v75 = vpop.f32.mrb[0].mxu0
  %v76 = vpop.f32.mrb[0].mxu0
  %v77 = vpop.f32.mrb[0].mxu0
  %78 = vdwg.mxu0
  %v80 = vsel %vm32, %v23, 0
  %v83 = vsel %vm32, %v27, 0
  %85 = vmatprep.subr.bf16.mxu0 0
  %86 = vmatpush1.bf16.xpose.msra.mxu0 %v83
  %87 = vmatprep.subr.bf16.mxu0 0
  %88 = vmatpush1.bf16.xpose.msra.mxu0 0
  %89 = vmatprep.subr.bf16.mxu0 0
  %90 = vmatpush1.bf16.xpose.msra.mxu0 0
  %91 = vmatprep.subr.bf16.mxu0 0
  %92 = vmatpush1.bf16.xpose.msra.mxu0 0
  %93 = vmatprep.subr.bf16.mxu0 0
  %94 = vmatpush1.bf16.xpose.msra.mxu0 0
  %95 = vmatprep.subr.bf16.mxu0 0
  %96 = vmatpush1.bf16.xpose.msra.mxu0 0
  %97 = vmatprep.subr.bf16.mxu0 0
  %98 = vmatpush1.bf16.xpose.msra.mxu0 0
  %99 = vmatprep.subr.bf16.mxu0 0
  %100 = vmatpush1.bf16.xpose.msra.mxu0 0
  %101 = vmatprep.subr.bf16.mxu0 0
  %102 = vmatpush1.bf16.xpose.msra.mxu0 0
  %103 = vmatprep.subr.bf16.mxu0 0
  %104 = vmatpush1.bf16.xpose.msra.mxu0 0
  %105 = vmatprep.subr.bf16.mxu0 0
  %106 = vmatpush1.bf16.xpose.msra.mxu0 0
  %107 = vmatprep.subr.bf16.mxu0 0
  %108 = vmatpush1.bf16.xpose.msra.mxu0 0
  %109 = vmatprep.subr.bf16.mxu0 0
  %110 = vmatpush1.bf16.xpose.msra.mxu0 0
  %111 = vmatprep.subr.bf16.mxu0 0
  %112 = vmatpush1.bf16.xpose.msra.mxu0 0
  %113 = vmatprep.subr.bf16.mxu0 0
  %114 = vmatpush1.bf16.xpose.msra.mxu0 0
  %115 = vmatprep.subr.bf16.mxu0 0
  %116 = vmatpush1.bf16.xpose.msra.mxu0 0
  %117 = vmatprep.mubr.bf16.mxu0 0
  %118 = vmatmul.mubr.bf16.gmra.mrb[0].mxu0 %v80
  %v119 = vpop.f32.mrb[0].mxu0
  %v120 = vadd.f32 0.0, %v119
  %v121 = vpop.f32.mrb[0].mxu0
  %v122 = vpop.f32.mrb[0].mxu0
  %v123 = vpop.f32.mrb[0].mxu0
  %124 = vdwg.mxu0
  %vm125 = vcmask 34816
  %v126 = vsel %vm125, %v74, -inf
  %127 = vmax.xlane.f32.xlu0 %v126
  %v128 = vpop.xlane.xlu0 %127
  %v129 = vsel %vm125, %v120, -inf
  %130 = vmax.xlane.f32.xlu0 %v129
  %v131 = vpop.xlane.xlu0 %130
  %v132 = vsub.f32 %v74, %v128
  %v133 = vsub.f32 %v120, %v131
  %v134 = vmul.f32 %v132, 1.442695
  %v135 = vpow.pop %v134
  %v136 = vmul.f32 %v133, 1.442695
  %v137 = vpow.pop %v136
  %v138 = vsel %vm125, %v135, 0.0
  %139 = vadd.xlane.f32.xlu0 %v138
  %v140 = vpop.xlane.xlu0 %139
  %v141 = vsel %vm125, %v137, 0.0
  %142 = vadd.xlane.f32.xlu0 %v141
  %v143 = vpop.xlane.xlu0 %142
  %v144 = vmul.f32 %v140, 0.9
  %v145 = vmul.f32 %v143, 0.9
  %v146 = vrcp.pop %v144
  %v147 = vmul.f32 %v135, %v146
  %v148 = vrcp.pop %v145
  %v149 = vmul.f32 %v137, %v148
  %v150 = vld [vmem:[%s3] sm:$0x7]
  %v151 = vld [vmem:[%s3 + $0x4] sm:$0x7]
  %vm152 = vcmp.ge.f32.partialorder %v150, 0.1
  %vm153 = vcmp.ge.f32.partialorder %v151, 0.1
  %v154 = vsel %vm152, %v147, 0.0
  %v155 = vsel %vm153, %v149, 0.0
  %v156 = vpack.c.bf16 %v154, %v154
  %v157 = vpack.c.bf16 %v155, %v155
  %vm158 = vcmask 39936
  %v160 = vsel %vm158, %v156, 0
  %vm162 = vcmask 1041408
  %vm163 = vcmask 1042432
  %v164 = vsel %vm162, 4294967295, 65535
  %v165 = vsel %vm163, %v164, 0
  %v167 = vand.u32 %v30, %v165
  %169 = vmatprep.subr.bf16.mxu0 0
  %170 = vmatpush1.bf16.msra.mxu0 %v167
  %171 = vmatprep.subr.bf16.mxu0 0
  %172 = vmatpush1.bf16.msra.mxu0 0
  %173 = vmatprep.subr.bf16.mxu0 0
  %174 = vmatpush1.bf16.msra.mxu0 0
  %175 = vmatprep.subr.bf16.mxu0 0
  %176 = vmatpush1.bf16.msra.mxu0 0
  %177 = vmatprep.subr.bf16.mxu0 0
  %178 = vmatpush1.bf16.msra.mxu0 0
  %179 = vmatprep.subr.bf16.mxu0 0
  %180 = vmatpush1.bf16.msra.mxu0 0
  %181 = vmatprep.subr.bf16.mxu0 0
  %182 = vmatpush1.bf16.msra.mxu0 0
  %183 = vmatprep.subr.bf16.mxu0 0
  %184 = vmatpush1.bf16.msra.mxu0 0
  %185 = vmatprep.subr.bf16.mxu0 0
  %186 = vmatpush1.bf16.msra.mxu0 0
  %187 = vmatprep.subr.bf16.mxu0 0
  %188 = vmatpush1.bf16.msra.mxu0 0
  %189 = vmatprep.subr.bf16.mxu0 0
  %190 = vmatpush1.bf16.msra.mxu0 0
  %191 = vmatprep.subr.bf16.mxu0 0
  %192 = vmatpush1.bf16.msra.mxu0 0
  %193 = vmatprep.subr.bf16.mxu0 0
  %194 = vmatpush1.bf16.msra.mxu0 0
  %195 = vmatprep.subr.bf16.mxu0 0
  %196 = vmatpush1.bf16.msra.mxu0 0
  %197 = vmatprep.subr.bf16.mxu0 0
  %198 = vmatpush1.bf16.msra.mxu0 0
  %199 = vmatprep.subr.bf16.mxu0 0
  %200 = vmatpush1.bf16.msra.mxu0 0
  %201 = vmatprep.mubr.bf16.mxu0 0
  %202 = vmatmul.mubr.bf16.gmra.mrb[0].mxu0 %v160
  %v203 = vpop.f32.mrb[0].mxu0
  %v204 = vadd.f32 0.0, %v203
  %v205 = vpop.f32.mrb[0].mxu0
  %v206 = vpop.f32.mrb[0].mxu0
  %v207 = vpop.f32.mrb[0].mxu0
  %208 = vdwg.mxu0
  %v210 = vsel %vm158, %v157, 0
  %v213 = vand.u32 %v31, %v165
  %215 = vmatprep.subr.bf16.mxu0 0
  %216 = vmatpush1.bf16.msra.mxu0 %v213
  %217 = vmatprep.subr.bf16.mxu0 0
  %218 = vmatpush1.bf16.msra.mxu0 0
  %219 = vmatprep.subr.bf16.mxu0 0
  %220 = vmatpush1.bf16.msra.mxu0 0
  %221 = vmatprep.subr.bf16.mxu0 0
  %222 = vmatpush1.bf16.msra.mxu0 0
  %223 = vmatprep.subr.bf16.mxu0 0
  %224 = vmatpush1.bf16.msra.mxu0 0
  %225 = vmatprep.subr.bf16.mxu0 0
  %226 = vmatpush1.bf16.msra.mxu0 0
  %227 = vmatprep.subr.bf16.mxu0 0
  %228 = vmatpush1.bf16.msra.mxu0 0
  %229 = vmatprep.subr.bf16.mxu0 0
  %230 = vmatpush1.bf16.msra.mxu0 0
  %231 = vmatprep.subr.bf16.mxu0 0
  %232 = vmatpush1.bf16.msra.mxu0 0
  %233 = vmatprep.subr.bf16.mxu0 0
  %234 = vmatpush1.bf16.msra.mxu0 0
  %235 = vmatprep.subr.bf16.mxu0 0
  %236 = vmatpush1.bf16.msra.mxu0 0
  %237 = vmatprep.subr.bf16.mxu0 0
  %238 = vmatpush1.bf16.msra.mxu0 0
  %239 = vmatprep.subr.bf16.mxu0 0
  %240 = vmatpush1.bf16.msra.mxu0 0
  %241 = vmatprep.subr.bf16.mxu0 0
  %242 = vmatpush1.bf16.msra.mxu0 0
  %243 = vmatprep.subr.bf16.mxu0 0
  %244 = vmatpush1.bf16.msra.mxu0 0
  %245 = vmatprep.subr.bf16.mxu0 0
  %246 = vmatpush1.bf16.msra.mxu0 0
  %247 = vmatprep.mubr.bf16.mxu0 0
  %248 = vmatmul.mubr.bf16.gmra.mrb[0].mxu0 %v210
  %v249 = vpop.f32.mrb[0].mxu0
  %v250 = vadd.f32 0.0, %v249
  %v251 = vpop.f32.mrb[0].mxu0
  %v252 = vpop.f32.mrb[0].mxu0
  %v253 = vpop.f32.mrb[0].mxu0
  %254 = vdwg.mxu0
  %vm255 = vcmask 43008
  %256 = vst.msk [vmem:[%s4] sm:$0x7] %vm255, %v204
  %257 = vst.msk [vmem:[%s4 + $0x4] sm:$0x7] %vm255, %v250
  // Predicated region
  $region18: #{tpu_custom_call.1} parent=0 // pred_check
    _
  $region19: #{tpu_custom_call.1} parent=0 // pred_check_branch
    %259 = sbr.rel (0) target = $region21
  $region20: #{tpu_custom_call.1} parent=0 // pred_region
    _
  $region21: #{tpu_custom_call.1} parent=0 // pred_fallthru
    _
  // Predicated region
  $region22: #{tpu_custom_call.1} parent=0 // pred_check
    _
  $region23: #{tpu_custom_call.1} parent=0 // pred_check_branch
    %261 = sbr.rel (0) target = $region25
  $region24: #{tpu_custom_call.1} parent=0 // pred_region
    _
  $region25: #{tpu_custom_call.1} parent=0 // pred_fallthru
    _

</llo_original>
